<compile_context>
chip_gen: v5e
topology: v5e:2x2
jax: 0.10.0
libtpu: 0.0.40
codegen_flags: <defaults>
</compile_context>

<pallas_src>
import jax
import jax.numpy as jnp
from jax.experimental import pallas as pl
from jax.experimental.pallas import tpu as pltpu

SCALE_WEIGHT = 0.5 ** 0.5


def _round_up(x, m):
    return (x + m - 1) // m * m


# ----------------------------- fused Pallas kernel -----------------------------

def glu_fused_kernel(emb_ref, wlin_ref, blin_ref, wconv_ref, bconv_ref,
                     o_ref, xpad_ref, xcat_ref):
    # emb_ref  : (Bblk, T, Kp)            input embeddings (K zero-padded)
    # wlin_ref : (Kp, Hp)   blin_ref: (1, Hp)
    # wconv_ref: (L, width*Hp, 2*Hp)      conv taps stacked along the K dim
    # bconv_ref: (L, 1, 2*Hp)
    # o_ref    : (Bblk, T, Hp)            final activations (padded hidden dim)
    # xpad_ref : VMEM (Bblk, T+2*pad, Hp) in-kernel zero-padded sequence
    # xcat_ref : VMEM (Bblk, T, width*Hp) shifted windows gathered for 1 matmul
    Bblk, T, Kp = emb_ref.shape
    Hp = wlin_ref.shape[1]
    L = wconv_ref.shape[0]
    width = wconv_ref.shape[1] // Hp
    pad = width // 2
    rows = Bblk * T

    # ---- input linear: one (rows, Kp) @ (Kp, Hp) matmul ----
    x = jnp.dot(emb_ref[...].reshape(rows, Kp), wlin_ref[...],
                preferred_element_type=jnp.float32) + blin_ref[...]

    # Zero once per grid step: only the 2*pad boundary rows must stay zero;
    # the interior is overwritten every layer.
    xpad_ref[...] = jnp.zeros_like(xpad_ref)

    # ---- stacked gated conv layers; activations stay resident in VMEM ----
    for l in range(L):                              # static unroll over layers
        xpad_ref[:, pad:pad + T, :] = x.reshape(Bblk, T, Hp)
        for k in range(width):                      # lane-block aligned stores
            xcat_ref[:, :, k * Hp:(k + 1) * Hp] = xpad_ref[:, k:k + T, :]
        # single matmul per layer (K = width*Hp), bias folded in after the dot
        y = jnp.dot(xcat_ref[...].reshape(rows, width * Hp), wconv_ref[l],
                    preferred_element_type=jnp.float32) + bconv_ref[l]
        glu = y[:, :Hp] * jax.nn.sigmoid(y[:, Hp:])  # out * sigmoid(gate)
        x = (x + glu) * SCALE_WEIGHT                 # residual + scale

    o_ref[...] = x.reshape(Bblk, T, Hp).astype(o_ref.dtype)


# ----------------------------- GLU forward -----------------------------

def glu_forward(emb, params):
    """emb: (B, T, input_size) -> (B, hidden_size, T)  (matches the PyTorch GLU)."""
    # TODO(synk): dropout is omitted (eval/inference semantics).
    B, T, K = emb.shape
    w_lin, b_lin = params["w_lin"], params["b_lin"]
    H = w_lin.shape[1]
    conv_layers = params["conv_layers"]
    L = len(conv_layers)
    width = conv_layers[0][0].shape[0]
    pad = width // 2

    Hp = _round_up(H, 128)       # lane-dense hidden dim
    Kp = _round_up(K, 8)         # sublane-aligned contraction dim

    # --- pack / zero-pad parameters into matmul-friendly layouts ---
    emb_p = jnp.pad(emb.astype(jnp.float32), ((0, 0), (0, 0), (0, Kp - K)))
    wlin_p = jnp.pad(w_lin, ((0, Kp - K), (0, Hp - H)))
    blin_p = jnp.pad(b_lin, ((0, 0), (0, Hp - H)))

    wconv_list, bconv_list = [], []
    for w, b in conv_layers:                 # w: (width, H, 2H) [out | gate]
        wp = jnp.zeros((width, Hp, 2 * Hp), jnp.float32)
        wp = wp.at[:, :H, :H].set(w[:, :, :H])            # out half
        wp = wp.at[:, :H, Hp:Hp + H].set(w[:, :, H:])     # gate half
        bp = jnp.zeros((1, 2 * Hp), jnp.float32)
        bp = bp.at[:, :H].set(b[:, :H])
        bp = bp.at[:, Hp:Hp + H].set(b[:, H:])
        wconv_list.append(wp.reshape(width * Hp, 2 * Hp))
        bconv_list.append(bp)
    wconv = jnp.stack(wconv_list)            # (L, width*Hp, 2*Hp)
    bconv = jnp.stack(bconv_list)            # (L, 1, 2*Hp)

    # --- choose batch block so the per-step working set fits a VMEM budget ---
    per_b_act = 4 * T * (2 * Kp + Hp * (8 + width))   # rough f32 bytes / batch elem
    Bblk = max(1, min(B, (24 << 20) // max(per_b_act, 1)))
    while B % Bblk:
        Bblk -= 1
    grid = (B // Bblk,)

    weight_bytes = 4 * (Kp * Hp + Hp + L * width * Hp * 2 * Hp + L * 2 * Hp)
    vmem_limit = int(min(64 << 20,
                         max(32 << 20, 2 * weight_bytes + 3 * Bblk * per_b_act)))

    flops = 2 * B * T * Kp * Hp + L * 2 * B * T * (width * Hp) * (2 * Hp)
    bytes_accessed = 4 * int(emb_p.size + wlin_p.size + blin_p.size
                             + wconv.size + bconv.size + B * T * Hp)
    cost = pl.CostEstimate(flops=int(flops),
                           transcendentals=int(L * B * T * Hp),
                           bytes_accessed=bytes_accessed)

    out_p = pl.pallas_call(
        glu_fused_kernel,
        out_shape=jax.ShapeDtypeStruct((B, T, Hp), jnp.float32),
        grid=grid,
        in_specs=[
            pl.BlockSpec((Bblk, T, Kp), lambda i: (i, 0, 0)),
            pl.BlockSpec((Kp, Hp), lambda i: (0, 0)),
            pl.BlockSpec((1, Hp), lambda i: (0, 0)),
            pl.BlockSpec((L, width * Hp, 2 * Hp), lambda i: (0, 0, 0)),
            pl.BlockSpec((L, 1, 2 * Hp), lambda i: (0, 0, 0)),
        ],
        out_specs=pl.BlockSpec((Bblk, T, Hp), lambda i: (i, 0, 0)),
        scratch_shapes=[
            pltpu.VMEM((Bblk, T + 2 * pad, Hp), jnp.float32),
            pltpu.VMEM((Bblk, T, width * Hp), jnp.float32),
        ],
        compiler_params=pltpu.CompilerParams(
            dimension_semantics=("parallel",),
            vmem_limit_bytes=vmem_limit),
        cost_estimate=cost,
    )(emb_p, wlin_p, blin_p, wconv, bconv)

    # drop padded hidden columns, then (B, T, H) -> (B, H, T) like out.squeeze(3)
    return jnp.transpose(out_p[:, :, :H], (0, 2, 1))


# ----------------------------- parameter init -----------------------------

def init_params(key, num_layers, hidden_size, cnn_kernel_width, dropout,
                input_size):
    keys = jax.random.split(key, 2 + 2 * num_layers)
    # nn.Linear default init
    lb = 1.0 / (input_size ** 0.5)
    w_lin = jax.random.uniform(keys[0], (input_size, hidden_size),
                               jnp.float32, -lb, lb)
    b_lin = jax.random.uniform(keys[1], (1, hidden_size),
                               jnp.float32, -lb, lb)

    conv_layers = []
    gain = (4.0 * (1.0 - dropout)) ** 0.5
    fan_in = hidden_size * cnn_kernel_width        # in_ch * kh * kw (kw=1)
    fan_out = 2 * hidden_size * cnn_kernel_width
    xbound = gain * (6.0 / (fan_in + fan_out)) ** 0.5
    bbound = 1.0 / (fan_in ** 0.5)
    for l in range(num_layers):
        # stored directly in "matmul" layout: (width, H_in, 2*H_out) = [out|gate]
        w = jax.random.uniform(keys[2 + 2 * l],
                               (cnn_kernel_width, hidden_size, 2 * hidden_size),
                               jnp.float32, -xbound, xbound)
        b = jax.random.uniform(keys[3 + 2 * l], (1, 2 * hidden_size),
                               jnp.float32, -bbound, bbound)
        conv_layers.append((w, b))

    return {"w_lin": w_lin, "b_lin": b_lin, "conv_layers": conv_layers}


# ----------------------------- pure-JAX reference -----------------------------

def glu_reference(emb, params):
    B, T, _ = emb.shape
    H = params["w_lin"].shape[1]
    x = emb.reshape(B * T, -1) @ params["w_lin"] + params["b_lin"]
    x = x.reshape(B, T, H)
    for w, b in params["conv_layers"]:
        width = w.shape[0]
        pad = width // 2
        xp = jnp.pad(x, ((0, 0), (pad, pad), (0, 0)))
        y = jnp.broadcast_to(b, (B, T, 2 * H)).astype(jnp.float32)
        for k in range(width):
            y = y + jnp.einsum("bth,ho->bto", xp[:, k:k + T, :], w[k])
        out, gate = y[..., :H], y[..., H:]
        x = (x + out * jax.nn.sigmoid(gate)) * SCALE_WEIGHT
    return jnp.transpose(x, (0, 2, 1))


# ----------------------------- main -----------------------------

if __name__ == "__main__":
    num_layers = 2
    hidden_size = 32
    cnn_kernel_width = 3
    dropout = 0.2
    input_size = 24
    B, T = 2, 8

    key = jax.random.PRNGKey(0)
    k_param, k_emb = jax.random.split(key)
    params = init_params(k_param, num_layers, hidden_size, cnn_kernel_width,
                         dropout, input_size)
    emb = jax.random.normal(k_emb, (B, T, input_size), jnp.float32)

    out = jax.block_until_ready(glu_forward(emb, params))
    ref = glu_reference(emb, params)

    assert out.shape == (B, hidden_size, T), out.shape
    assert jnp.allclose(out, ref, atol=1e-5, rtol=1e-5), \
        float(jnp.abs(out - ref).max())

    print("KERNEL_OK")
</pallas_src>

<mosaic_0001>
module attributes {stable_mosaic.version = 11 : i64} {
  func.func @glu_fused_kernel(%arg0: i32, %arg1: memref<2x8x24xf32, #tpu.memory_space<vmem>>, %arg2: memref<24x128xf32, #tpu.memory_space<vmem>>, %arg3: memref<1x128xf32, #tpu.memory_space<vmem>>, %arg4: memref<2x384x256xf32, #tpu.memory_space<vmem>>, %arg5: memref<2x1x256xf32, #tpu.memory_space<vmem>>, %arg6: memref<2x8x128xf32, #tpu.memory_space<vmem>>, %arg7: memref<2x10x128xf32, #tpu.memory_space<vmem>>, %arg8: memref<2x8x384xf32, #tpu.memory_space<vmem>>) attributes {dimension_semantics = [#tpu.dimension_semantics<parallel>], iteration_bounds = array<i64: 1>, scalar_prefetch = 0 : i64, scratch_operands = 2 : i64, tpu.core_type = #tpu.core_type<tc>, window_params = [{transform_indices = @transform_0, window_bounds = array<i64: 2, 8, 24>}, {pipeline_mode = #tpu.pipeline_mode<synchronous>, transform_indices = @transform_1, window_bounds = array<i64: 24, 128>}, {pipeline_mode = #tpu.pipeline_mode<synchronous>, transform_indices = @transform_2, window_bounds = array<i64: 1, 128>}, {pipeline_mode = #tpu.pipeline_mode<synchronous>, transform_indices = @transform_3, window_bounds = array<i64: 2, 384, 256>}, {pipeline_mode = #tpu.pipeline_mode<synchronous>, transform_indices = @transform_4, window_bounds = array<i64: 2, 1, 256>}, {transform_indices = @transform_5, window_bounds = array<i64: 2, 8, 128>}]} {
    %c0 = arith.constant 0 : index
    %c0_0 = arith.constant 0 : index
    %c0_1 = arith.constant 0 : index
    %0 = vector.load %arg1[%c0, %c0_0, %c0_1] : memref<2x8x24xf32, #tpu.memory_space<vmem>>, vector<2x8x24xf32>
    %1 = vector.shape_cast %0 : vector<2x8x24xf32> to vector<16x24xf32>
    %c0_2 = arith.constant 0 : index
    %c0_3 = arith.constant 0 : index
    %2 = vector.load %arg2[%c0_2, %c0_3] : memref<24x128xf32, #tpu.memory_space<vmem>>, vector<24x128xf32>
    %cst = arith.constant dense<0.000000e+00> : vector<16x128xf32>
    %3 = tpu.matmul %1, %2, %cst {dimension_numbers = #tpu.dot_dimension_numbers<[1], [0], [0], [1], [0, 0, 1, 1], [], []>} : vector<16x24xf32>, vector<24x128xf32>, vector<16x128xf32> -> vector<16x128xf32>
    %c0_4 = arith.constant 0 : index
    %c0_5 = arith.constant 0 : index
    %4 = vector.load %arg3[%c0_4, %c0_5] : memref<1x128xf32, #tpu.memory_space<vmem>>, vector<1x128xf32>
    %5 = vector.broadcast %4 : vector<1x128xf32> to vector<16x128xf32>
    %6 = arith.addf %3, %5 : vector<16x128xf32>
    %cst_6 = arith.constant 0.000000e+00 : f32
    %7 = vector.broadcast %cst_6 : f32 to vector<2x10x128xf32>
    %c0_7 = arith.constant 0 : index
    %c0_8 = arith.constant 0 : index
    %c0_9 = arith.constant 0 : index
    %8 = vector.load %arg7[%c0_7, %c0_8, %c0_9] : memref<2x10x128xf32, #tpu.memory_space<vmem>>, vector<2x10x128xf32>
    tpu.vector_store %arg7[%c0_7, %c0_8, %c0_9], %7 {strides = array<i32>} : memref<2x10x128xf32, #tpu.memory_space<vmem>>, vector<2x10x128xf32>,
    %9 = vector.shape_cast %6 : vector<16x128xf32> to vector<2x8x128xf32>
    %c0_10 = arith.constant 0 : index
    %c1 = arith.constant 1 : index
    %c0_11 = arith.constant 0 : index
    %10 = vector.load %arg7[%c0_10, %c1, %c0_11] : memref<2x10x128xf32, #tpu.memory_space<vmem>>, vector<2x8x128xf32>
    tpu.vector_store %arg7[%c0_10, %c1, %c0_11], %9 {strides = array<i32>} : memref<2x10x128xf32, #tpu.memory_space<vmem>>, vector<2x8x128xf32>,
    %c0_12 = arith.constant 0 : index
    %c0_13 = arith.constant 0 : index
    %c0_14 = arith.constant 0 : index
    %11 = vector.load %arg7[%c0_12, %c0_13, %c0_14] : memref<2x10x128xf32, #tpu.memory_space<vmem>>, vector<2x8x128xf32>
    %c0_15 = arith.constant 0 : index
    %c0_16 = arith.constant 0 : index
    %c0_17 = arith.constant 0 : index
    %12 = vector.load %arg8[%c0_15, %c0_16, %c0_17] : memref<2x8x384xf32, #tpu.memory_space<vmem>>, vector<2x8x128xf32>
    tpu.vector_store %arg8[%c0_15, %c0_16, %c0_17], %11 {strides = array<i32>} : memref<2x8x384xf32, #tpu.memory_space<vmem>>, vector<2x8x128xf32>,
    %c0_18 = arith.constant 0 : index
    %c1_19 = arith.constant 1 : index
    %c0_20 = arith.constant 0 : index
    %13 = vector.load %arg7[%c0_18, %c1_19, %c0_20] : memref<2x10x128xf32, #tpu.memory_space<vmem>>, vector<2x8x128xf32>
    %c0_21 = arith.constant 0 : index
    %c0_22 = arith.constant 0 : index
    %c128 = arith.constant 128 : index
    %14 = vector.load %arg8[%c0_21, %c0_22, %c128] : memref<2x8x384xf32, #tpu.memory_space<vmem>>, vector<2x8x128xf32>
    tpu.vector_store %arg8[%c0_21, %c0_22, %c128], %13 {strides = array<i32>} : memref<2x8x384xf32, #tpu.memory_space<vmem>>, vector<2x8x128xf32>,
    %c0_23 = arith.constant 0 : index
    %c2 = arith.constant 2 : index
    %c0_24 = arith.constant 0 : index
    %15 = vector.load %arg7[%c0_23, %c2, %c0_24] : memref<2x10x128xf32, #tpu.memory_space<vmem>>, vector<2x8x128xf32>
    %c0_25 = arith.constant 0 : index
    %c0_26 = arith.constant 0 : index
    %c256 = arith.constant 256 : index
    %16 = vector.load %arg8[%c0_25, %c0_26, %c256] : memref<2x8x384xf32, #tpu.memory_space<vmem>>, vector<2x8x128xf32>
    tpu.vector_store %arg8[%c0_25, %c0_26, %c256], %15 {strides = array<i32>} : memref<2x8x384xf32, #tpu.memory_space<vmem>>, vector<2x8x128xf32>,
    %c0_27 = arith.constant 0 : index
    %c0_28 = arith.constant 0 : index
    %c0_29 = arith.constant 0 : index
    %17 = vector.load %arg8[%c0_27, %c0_28, %c0_29] : memref<2x8x384xf32, #tpu.memory_space<vmem>>, vector<2x8x384xf32>
    %18 = vector.shape_cast %17 : vector<2x8x384xf32> to vector<16x384xf32>
    %c0_30 = arith.constant 0 : index
    %c0_31 = arith.constant 0 : index
    %c0_32 = arith.constant 0 : index
    %19 = vector.load %arg4[%c0_30, %c0_31, %c0_32] : memref<2x384x256xf32, #tpu.memory_space<vmem>>, vector<1x384x256xf32>
    %20 = vector.shape_cast %19 : vector<1x384x256xf32> to vector<384x256xf32>
    %cst_33 = arith.constant dense<0.000000e+00> : vector<16x256xf32>
    %21 = tpu.matmul %18, %20, %cst_33 {dimension_numbers = #tpu.dot_dimension_numbers<[1], [0], [0], [1], [0, 0, 1, 1], [], []>} : vector<16x384xf32>, vector<384x256xf32>, vector<16x256xf32> -> vector<16x256xf32>
    %c0_34 = arith.constant 0 : index
    %c0_35 = arith.constant 0 : index
    %c0_36 = arith.constant 0 : index
    %22 = vector.load %arg5[%c0_34, %c0_35, %c0_36] : memref<2x1x256xf32, #tpu.memory_space<vmem>>, vector<1x1x256xf32>
    %23 = vector.shape_cast %22 : vector<1x1x256xf32> to vector<1x256xf32>
    %24 = vector.broadcast %23 : vector<1x256xf32> to vector<16x256xf32>
    %25 = arith.addf %21, %24 : vector<16x256xf32>
    %26 = vector.extract_strided_slice %25 {offsets = [0, 0], sizes = [16, 128], strides = [1, 1]} : vector<16x256xf32> to vector<16x128xf32>
    %27 = vector.extract_strided_slice %25 {offsets = [0, 128], sizes = [16, 128], strides = [1, 1]} : vector<16x256xf32> to vector<16x128xf32>
    %28 = arith.negf %27 : vector<16x128xf32>
    %29 = math.exp %28 : vector<16x128xf32>
    %cst_37 = arith.constant 1.000000e+00 : f32
    %30 = vector.broadcast %cst_37 : f32 to vector<16x128xf32>
    %31 = arith.addf %30, %29 : vector<16x128xf32>
    %32 = arith.divf %30, %31 : vector<16x128xf32>
    %33 = arith.mulf %26, %32 : vector<16x128xf32>
    %34 = arith.addf %6, %33 : vector<16x128xf32>
    %cst_38 = arith.constant 0.707106769 : f32
    %35 = vector.broadcast %cst_38 : f32 to vector<16x128xf32>
    %36 = arith.mulf %34, %35 : vector<16x128xf32>
    %37 = vector.shape_cast %36 : vector<16x128xf32> to vector<2x8x128xf32>
    %c0_39 = arith.constant 0 : index
    %c1_40 = arith.constant 1 : index
    %c0_41 = arith.constant 0 : index
    %38 = vector.load %arg7[%c0_39, %c1_40, %c0_41] : memref<2x10x128xf32, #tpu.memory_space<vmem>>, vector<2x8x128xf32>
    tpu.vector_store %arg7[%c0_39, %c1_40, %c0_41], %37 {strides = array<i32>} : memref<2x10x128xf32, #tpu.memory_space<vmem>>, vector<2x8x128xf32>,
    %c0_42 = arith.constant 0 : index
    %c0_43 = arith.constant 0 : index
    %c0_44 = arith.constant 0 : index
    %39 = vector.load %arg7[%c0_42, %c0_43, %c0_44] : memref<2x10x128xf32, #tpu.memory_space<vmem>>, vector<2x8x128xf32>
    %c0_45 = arith.constant 0 : index
    %c0_46 = arith.constant 0 : index
    %c0_47 = arith.constant 0 : index
    %40 = vector.load %arg8[%c0_45, %c0_46, %c0_47] : memref<2x8x384xf32, #tpu.memory_space<vmem>>, vector<2x8x128xf32>
    tpu.vector_store %arg8[%c0_45, %c0_46, %c0_47], %39 {strides = array<i32>} : memref<2x8x384xf32, #tpu.memory_space<vmem>>, vector<2x8x128xf32>,
    %c0_48 = arith.constant 0 : index
    %c1_49 = arith.constant 1 : index
    %c0_50 = arith.constant 0 : index
    %41 = vector.load %arg7[%c0_48, %c1_49, %c0_50] : memref<2x10x128xf32, #tpu.memory_space<vmem>>, vector<2x8x128xf32>
    %c0_51 = arith.constant 0 : index
    %c0_52 = arith.constant 0 : index
    %c128_53 = arith.constant 128 : index
    %42 = vector.load %arg8[%c0_51, %c0_52, %c128_53] : memref<2x8x384xf32, #tpu.memory_space<vmem>>, vector<2x8x128xf32>
    tpu.vector_store %arg8[%c0_51, %c0_52, %c128_53], %41 {strides = array<i32>} : memref<2x8x384xf32, #tpu.memory_space<vmem>>, vector<2x8x128xf32>,
    %c0_54 = arith.constant 0 : index
    %c2_55 = arith.constant 2 : index
    %c0_56 = arith.constant 0 : index
    %43 = vector.load %arg7[%c0_54, %c2_55, %c0_56] : memref<2x10x128xf32, #tpu.memory_space<vmem>>, vector<2x8x128xf32>
    %c0_57 = arith.constant 0 : index
    %c0_58 = arith.constant 0 : index
    %c256_59 = arith.constant 256 : index
    %44 = vector.load %arg8[%c0_57, %c0_58, %c256_59] : memref<2x8x384xf32, #tpu.memory_space<vmem>>, vector<2x8x128xf32>
    tpu.vector_store %arg8[%c0_57, %c0_58, %c256_59], %43 {strides = array<i32>} : memref<2x8x384xf32, #tpu.memory_space<vmem>>, vector<2x8x128xf32>,
    %c0_60 = arith.constant 0 : index
    %c0_61 = arith.constant 0 : index
    %c0_62 = arith.constant 0 : index
    %45 = vector.load %arg8[%c0_60, %c0_61, %c0_62] : memref<2x8x384xf32, #tpu.memory_space<vmem>>, vector<2x8x384xf32>
    %46 = vector.shape_cast %45 : vector<2x8x384xf32> to vector<16x384xf32>
    %c1_63 = arith.constant 1 : index
    %c0_64 = arith.constant 0 : index
    %c0_65 = arith.constant 0 : index
    %47 = vector.load %arg4[%c1_63, %c0_64, %c0_65] : memref<2x384x256xf32, #tpu.memory_space<vmem>>, vector<1x384x256xf32>
    %48 = vector.shape_cast %47 : vector<1x384x256xf32> to vector<384x256xf32>
    %cst_66 = arith.constant dense<0.000000e+00> : vector<16x256xf32>
    %49 = tpu.matmul %46, %48, %cst_66 {dimension_numbers = #tpu.dot_dimension_numbers<[1], [0], [0], [1], [0, 0, 1, 1], [], []>} : vector<16x384xf32>, vector<384x256xf32>, vector<16x256xf32> -> vector<16x256xf32>
    %c1_67 = arith.constant 1 : index
    %c0_68 = arith.constant 0 : index
    %c0_69 = arith.constant 0 : index
    %50 = vector.load %arg5[%c1_67, %c0_68, %c0_69] : memref<2x1x256xf32, #tpu.memory_space<vmem>>, vector<1x1x256xf32>
    %51 = vector.shape_cast %50 : vector<1x1x256xf32> to vector<1x256xf32>
    %52 = vector.broadcast %51 : vector<1x256xf32> to vector<16x256xf32>
    %53 = arith.addf %49, %52 : vector<16x256xf32>
    %54 = vector.extract_strided_slice %53 {offsets = [0, 0], sizes = [16, 128], strides = [1, 1]} : vector<16x256xf32> to vector<16x128xf32>
    %55 = vector.extract_strided_slice %53 {offsets = [0, 128], sizes = [16, 128], strides = [1, 1]} : vector<16x256xf32> to vector<16x128xf32>
    %56 = arith.negf %55 : vector<16x128xf32>
    %57 = math.exp %56 : vector<16x128xf32>
    %cst_70 = arith.constant 1.000000e+00 : f32
    %58 = vector.broadcast %cst_70 : f32 to vector<16x128xf32>
    %59 = arith.addf %58, %57 : vector<16x128xf32>
    %60 = arith.divf %58, %59 : vector<16x128xf32>
    %61 = arith.mulf %54, %60 : vector<16x128xf32>
    %62 = arith.addf %36, %61 : vector<16x128xf32>
    %cst_71 = arith.constant 0.707106769 : f32
    %63 = vector.broadcast %cst_71 : f32 to vector<16x128xf32>
    %64 = arith.mulf %62, %63 : vector<16x128xf32>
    %65 = vector.shape_cast %64 : vector<16x128xf32> to vector<2x8x128xf32>
    %c0_72 = arith.constant 0 : index
    %c0_73 = arith.constant 0 : index
    %c0_74 = arith.constant 0 : index
    %66 = vector.load %arg6[%c0_72, %c0_73, %c0_74] : memref<2x8x128xf32, #tpu.memory_space<vmem>>, vector<2x8x128xf32>
    tpu.vector_store %arg6[%c0_72, %c0_73, %c0_74], %65 {strides = array<i32>} : memref<2x8x128xf32, #tpu.memory_space<vmem>>, vector<2x8x128xf32>,
    return
  }
  func.func @transform_0(%arg0: i32) -> (i32, i32, i32) {
    %c0_i32 = arith.constant 0 : i32
    %c0_i32_0 = arith.constant 0 : i32
    %c0_i32_1 = arith.constant 0 : i32
    return %arg0, %c0_i32, %c0_i32_0 : i32, i32, i32
  }
  func.func @transform_1(%arg0: i32) -> (i32, i32) {
    %c0_i32 = arith.constant 0 : i32
    %c0_i32_0 = arith.constant 0 : i32
    %c0_i32_1 = arith.constant 0 : i32
    return %c0_i32, %c0_i32_0 : i32, i32
  }
  func.func @transform_2(%arg0: i32) -> (i32, i32) {
    %c0_i32 = arith.constant 0 : i32
    %c0_i32_0 = arith.constant 0 : i32
    %c0_i32_1 = arith.constant 0 : i32
    return %c0_i32, %c0_i32_0 : i32, i32
  }
  func.func @transform_3(%arg0: i32) -> (i32, i32, i32) {
    %c0_i32 = arith.constant 0 : i32
    %c0_i32_0 = arith.constant 0 : i32
    %c0_i32_1 = arith.constant 0 : i32
    %c0_i32_2 = arith.constant 0 : i32
    return %c0_i32, %c0_i32_0, %c0_i32_1 : i32, i32, i32
  }
  func.func @transform_4(%arg0: i32) -> (i32, i32, i32) {
    %c0_i32 = arith.constant 0 : i32
    %c0_i32_0 = arith.constant 0 : i32
    %c0_i32_1 = arith.constant 0 : i32
    %c0_i32_2 = arith.constant 0 : i32
    return %c0_i32, %c0_i32_0, %c0_i32_1 : i32, i32, i32
  }
  func.func @transform_5(%arg0: i32) -> (i32, i32, i32) {
    %c0_i32 = arith.constant 0 : i32
    %c0_i32_0 = arith.constant 0 : i32
    %c0_i32_1 = arith.constant 0 : i32
    return %arg0, %c0_i32, %c0_i32_0 : i32, i32, i32
  }
}

</mosaic_0001>

<llo_original>
// kernel: tpu_custom_call.1
$region0: #{tpu_custom_call.1}
  #allocation0 [shape = 'u32[]', space=smem, size = 0x4, offset = 0x4, fixed_abs, tag = 'smem constant byte address 0x4 - core index']
  #allocation1 [shape = 'u32[72,128]{1,0:T(1,128)}', space=vmem, size = 0x9000, scoped, tag = 'internal scratch']
  #allocation2 [shape = 'f32[2,10,128]{2,1,0:T(8,128)}', space=vmem, size = 0x4000, scoped, tag = 'scratch operand']
  #allocation3 [shape = 'f32[2,8,384]{2,1,0:T(8,128)}', space=vmem, size = 0x6000, scoped, tag = 'scratch operand']
  %s0 = inlined_call_operand.hbm [shape: f32[2,8,24], index: 0, kind: input, shape index: {}]
  %s1 = inlined_call_operand.hbm [shape: f32[24,128], index: 1, kind: input, shape index: {}]
  %s2 = inlined_call_operand.vmem [shape: f32[1,128], index: 2, kind: input, shape index: {}]
  %s3 = inlined_call_operand.hbm [shape: f32[2,384,256], index: 3, kind: input, shape index: {}]
  %s4 = inlined_call_operand.hbm [shape: f32[2,1,256], index: 4, kind: input, shape index: {}]
  %s5 = inlined_call_operand.hbm [shape: f32[2,8,128], index: 5, kind: output, shape index: {}]
  %s6 = sld [smem:[#allocation0]]
  $region46: #{tpu_custom_call.1} parent=0
    _
  %s8 = ssub.s32 1, %s6
  %s9 = scalar_select 0, %s8, %s6
  $region1: #{tpu_custom_call.1} parent=0
    #allocation4 [shape = 'u8[8192]{0}', space=vmem, size = 0x2000, scoped, tag = 'input window, operand 0, single buffered']
    #allocation5 [shape = 's32[1]{0}', space=sflag, size = 0x4, scoped, tag = 'scoped memory for tpu_custom_call.1']
    #allocation6 [shape = 's32[1]{0}', space=sflag, size = 0x4, scoped, tag = 'scoped memory for tpu_custom_call.1']
    #allocation7 [shape = 'u8[12288]{0}', space=vmem, size = 0x3000, scoped, tag = 'input window, operand 1, single buffered']
    #allocation8 [shape = 's32[1]{0}', space=sflag, size = 0x4, scoped, tag = 'scoped memory for tpu_custom_call.1']
    #allocation9 [shape = 'u8[786432]{0}', space=vmem, size = 0xc0000, scoped, tag = 'input window, operand 3, single buffered']
    #allocation10 [shape = 'u8[2048]{0}', space=vmem, size = 0x800, scoped, tag = 'input window, operand 4, single buffered']
    #allocation11 [shape = 's32[1]{0}', space=sflag, size = 0x4, scoped, tag = 'scoped memory for tpu_custom_call.1']
    #allocation12 [shape = 'u8[8192]{0}', space=vmem, size = 0x2000, scoped, tag = 'output window, operand 0, single buffered']
    %10 = vsyncpa [#allocation5], 0
    %11 = vsyncpa [#allocation8], 0
    %12 = vsyncpa [#allocation11], 0
    %13 = vsyncpa [#allocation6], 0
    // Predicated region
    $region2: #{tpu_custom_call.1} parent=1 // pred_check
      _
    $region3: #{tpu_custom_call.1} parent=1 // pred_check_branch
      %15 = sbr.rel (0) target = $region5
    $region4: #{tpu_custom_call.1} parent=1 // pred_region
      %17 = vsyncadd [#allocation5], 0
      %s18 = sshll.u32 %s0, 4
      %s19 = int_to_ptr.hbm [resolvable:$true] %s18
      %s20 = sshll.u32 [#allocation4], 4
      %s21 = int_to_ptr.vmem [resolvable:$true] %s20
      %26 = dma.hbm_to_vmem [thread:$0]  %s19, 256, %s21, [#allocation5], 128, 128, 8
    $region5: #{tpu_custom_call.1} parent=1 // pred_fallthru
      _
    // Predicated region
    $region6: #{tpu_custom_call.1} parent=1 // pred_check
      _
    $region7: #{tpu_custom_call.1} parent=1 // pred_check_branch
      %28 = sbr.rel (0) target = $region9
    $region8: #{tpu_custom_call.1} parent=1 // pred_region
      %30 = vsyncadd [#allocation8], 0
      %s31 = sshll.u32 %s1, 4
      %s32 = int_to_ptr.hbm [resolvable:$true] %s31
      %s33 = sshll.u32 [#allocation7], 4
      %s34 = int_to_ptr.vmem [resolvable:$true] %s33
      %39 = dma.hbm_to_vmem [thread:$0]  %s32, 384, %s34, [#allocation8], 128, 128, 8
    $region9: #{tpu_custom_call.1} parent=1 // pred_fallthru
      _
    // Predicated region
    $region10: #{tpu_custom_call.1} parent=1 // pred_check
      _
    $region11: #{tpu_custom_call.1} parent=1 // pred_check_branch
      %41 = sbr.rel (0) target = $region13
    $region12: #{tpu_custom_call.1} parent=1 // pred_region
      _
    $region13: #{tpu_custom_call.1} parent=1 // pred_fallthru
      _
    // Predicated region
    $region14: #{tpu_custom_call.1} parent=1 // pred_check
      _
    $region15: #{tpu_custom_call.1} parent=1 // pred_check_branch
      %43 = sbr.rel (0) target = $region17
    $region16: #{tpu_custom_call.1} parent=1 // pred_region
      %45 = vsyncadd [#allocation8], 0
      %s46 = sshll.u32 %s3, 4
      %s47 = int_to_ptr.hbm [resolvable:$true] %s46
      %s48 = sshll.u32 [#allocation9], 4
      %s49 = int_to_ptr.vmem [resolvable:$true] %s48
      %54 = dma.hbm_to_vmem [thread:$0]  %s47, 24576, %s49, [#allocation8], 256, 256, 16
    $region17: #{tpu_custom_call.1} parent=1 // pred_fallthru
      _
    // Predicated region
    $region18: #{tpu_custom_call.1} parent=1 // pred_check
      _
    $region19: #{tpu_custom_call.1} parent=1 // pred_check_branch
      %56 = sbr.rel (0) target = $region21
    $region20: #{tpu_custom_call.1} parent=1 // pred_region
      %58 = vsyncadd [#allocation11], 0
      %s59 = sshll.u32 %s4, 4
      %s60 = int_to_ptr.hbm [resolvable:$true] %s59
      %s61 = sshll.u32 [#allocation10], 4
      %s62 = int_to_ptr.vmem [resolvable:$true] %s61
      %67 = dma.hbm_to_vmem [thread:$0]  %s60, 64, %s62, [#allocation11], 32, 32, 2
    $region21: #{tpu_custom_call.1} parent=1 // pred_fallthru
      _
    // Predicated region
    $region22: #{tpu_custom_call.1} parent=1 // pred_check
      _
    $region23: #{tpu_custom_call.1} parent=1 // pred_check_branch
      %69 = sbr.rel (0) target = $region25
    $region24: #{tpu_custom_call.1} parent=1 // pred_region
      %71 = dma.done [#allocation5], 256
    $region25: #{tpu_custom_call.1} parent=1 // pred_fallthru
      _
    // Predicated region
    $region26: #{tpu_custom_call.1} parent=1 // pred_check
      _
    $region27: #{tpu_custom_call.1} parent=1 // pred_check_branch
      %73 = sbr.rel (0) target = $region29
    $region28: #{tpu_custom_call.1} parent=1 // pred_region
      %75 = dma.done [#allocation8], 384
    $region29: #{tpu_custom_call.1} parent=1 // pred_fallthru
      _
    // Predicated region
    $region30: #{tpu_custom_call.1} parent=1 // pred_check
      _
    $region31: #{tpu_custom_call.1} parent=1 // pred_check_branch
      %77 = sbr.rel (0) target = $region33
    $region32: #{tpu_custom_call.1} parent=1 // pred_region
      %79 = dma.done [#allocation8], 24576
    $region33: #{tpu_custom_call.1} parent=1 // pred_fallthru
      _
    // Predicated region
    $region34: #{tpu_custom_call.1} parent=1 // pred_check
      _
    $region35: #{tpu_custom_call.1} parent=1 // pred_check_branch
      %81 = sbr.rel (0) target = $region37
    $region36: #{tpu_custom_call.1} parent=1 // pred_region
      %83 = dma.done [#allocation11], 64
    $region37: #{tpu_custom_call.1} parent=1 // pred_fallthru
      _
    %v84 = vld [vmem:[#allocation4] sm:$0xff]
    %v85 = vld [vmem:[#allocation4 + $0x8] sm:$0xff]
    %v86 = vld [vmem:[#allocation7] sm:$0xff]
    %v87 = vld [vmem:[#allocation7 + $0x8] sm:$0xff]
    %v88 = vld [vmem:[#allocation7 + $0x10] sm:$0xff]
    %v89 = vld [vmem:[%s2] sm:$0x1]
    %v91 = vperm.slane %v89, 0
    %vm93 = vcmask 195584
    %v95 = vsel %vm93, %v84, 0
    %v98 = vsel %vm93, %v85, 0
    %100 = vmatpush.msra.mxu0 0.0
    %101 = vmatpush.msra.mxu0 0.0
    %102 = vmatpush.msra.mxu0 0.0
    %103 = vmatpush.msra.mxu0 0.0
    %104 = vmatpush.msra.mxu0 0.0
    %105 = vmatpush.msra.mxu0 0.0
    %106 = vmatpush.msra.mxu0 0.0
    %107 = vmatpush.msra.mxu0 0.0
    %108 = vmatpush.msra.mxu0 0.0
    %109 = vmatpush.msra.mxu0 0.0
    %110 = vmatpush.msra.mxu0 0.0
    %111 = vmatpush.msra.mxu0 0.0
    %112 = vmatpush.msra.mxu0 0.0
    %113 = vmatpush.msra.mxu0 %v88
    %114 = vmatpush.msra.mxu0 %v87
    %115 = vmatpush.msra.mxu0 %v86
    %116 = vmatmul.f32.gmra.mxu0 %v95
    %v117 = vpop.f32.mrf.mxu0
    %v118 = vadd.f32 %v91, %v117
    %119 = vmatmul.f32.gmra.mxu0 %v98
    %v120 = vpop.f32.mrf.mxu0
    %v121 = vadd.f32 %v91, %v120
    %122 = vdwg.mxu0
    %123 = vst [vmem:[#allocation2] sm:$0xff] 0.0
    %124 = vst [vmem:[#allocation2 + $0x8] sm:$0x3] 0.0
    %125 = vst [vmem:[#allocation2 + $0x10] sm:$0xff] 0.0
    %126 = vst [vmem:[#allocation2 + $0x18] sm:$0x3] 0.0
    %127 = vst [vmem:[#allocation2 + $0x1] sm:$0xff] %v118
    %128 = vst [vmem:[#allocation2 + $0x11] sm:$0xff] %v121
    %v129 = vld [vmem:[#allocation2] sm:$0xff]
    %v130 = vld [vmem:[#allocation2 + $0x10] sm:$0xff]
    %131 = vst [vmem:[#allocation3] sm:$0xff] %v129
    %132 = vst [vmem:[#allocation3 + $0x18] sm:$0xff] %v130
    %v133 = vld [vmem:[#allocation2 + $0x1] sm:$0xff]
    %v134 = vld [vmem:[#allocation2 + $0x11] sm:$0xff]
    %135 = vst [vmem:[#allocation3 + $0x8] sm:$0xff] %v133
    %136 = vst [vmem:[#allocation3 + $0x20] sm:$0xff] %v134
    %v137 = vld [vmem:[#allocation2 + $0x2] sm:$0xff]
    %v138 = vld [vmem:[#allocation2 + $0x12] sm:$0xff]
    %139 = vst [vmem:[#allocation3 + $0x10] sm:$0xff] %v137
    %140 = vst [vmem:[#allocation3 + $0x28] sm:$0xff] %v138
    %v141 = vld [vmem:[#allocation3] sm:$0xff]
    %v142 = vld [vmem:[#allocation3 + $0x8] sm:$0xff]
    %v143 = vld [vmem:[#allocation3 + $0x10] sm:$0xff]
    %v144 = vld [vmem:[#allocation3 + $0x18] sm:$0xff]
    %v145 = vld [vmem:[#allocation3 + $0x20] sm:$0xff]
    %v146 = vld [vmem:[#allocation3 + $0x28] sm:$0xff]
    %v147 = vld [vmem:[#allocation9] sm:$0xff]
    %v148 = vld [vmem:[#allocation9 + $0x8] sm:$0xff]
    %v149 = vld [vmem:[#allocation9 + $0x10] sm:$0xff]
    %v150 = vld [vmem:[#allocation9 + $0x18] sm:$0xff]
    %v151 = vld [vmem:[#allocation9 + $0x20] sm:$0xff]
    %v152 = vld [vmem:[#allocation9 + $0x28] sm:$0xff]
    %v153 = vld [vmem:[#allocation9 + $0x30] sm:$0xff]
    %v154 = vld [vmem:[#allocation9 + $0x38] sm:$0xff]
    %v155 = vld [vmem:[#allocation9 + $0x40] sm:$0xff]
    %v156 = vld [vmem:[#allocation9 + $0x48] sm:$0xff]
    %v157 = vld [vmem:[#allocation9 + $0x50] sm:$0xff]
    %v158 = vld [vmem:[#allocation9 + $0x58] sm:$0xff]
    %v159 = vld [vmem:[#allocation9 + $0x60] sm:$0xff]
    %v160 = vld [vmem:[#allocation9 + $0x68] sm:$0xff]
    %v161 = vld [vmem:[#allocation9 + $0x70] sm:$0xff]
    %v162 = vld [vmem:[#allocation9 + $0x78] sm:$0xff]
    %v163 = vld [vmem:[#allocation9 + $0x80] sm:$0xff]
    %v164 = vld [vmem:[#allocation9 + $0x88] sm:$0xff]
    %v165 = vld [vmem:[#allocation9 + $0x90] sm:$0xff]
    %v166 = vld [vmem:[#allocation9 + $0x98] sm:$0xff]
    %v167 = vld [vmem:[#allocation9 + $0xa0] sm:$0xff]
    %v168 = vld [vmem:[#allocation9 + $0xa8] sm:$0xff]
    %v169 = vld [vmem:[#allocation9 + $0xb0] sm:$0xff]
    %v170 = vld [vmem:[#allocation9 + $0xb8] sm:$0xff]
    %v171 = vld [vmem:[#allocation9 + $0xc0] sm:$0xff]
    %v172 = vld [vmem:[#allocation9 + $0xc8] sm:$0xff]
    %v173 = vld [vmem:[#allocation9 + $0xd0] sm:$0xff]
    %v174 = vld [vmem:[#allocation9 + $0xd8] sm:$0xff]
    %v175 = vld [vmem:[#allocation9 + $0xe0] sm:$0xff]
    %v176 = vld [vmem:[#allocation9 + $0xe8] sm:$0xff]
    %v177 = vld [vmem:[#allocation9 + $0xf0] sm:$0xff]
    %v178 = vld [vmem:[#allocation9 + $0xf8] sm:$0xff]
    %v179 = vld [vmem:[#allocation9 + $0x100] sm:$0xff]
    %v180 = vld [vmem:[#allocation9 + $0x108] sm:$0xff]
    %v181 = vld [vmem:[#allocation9 + $0x110] sm:$0xff]
    %v182 = vld [vmem:[#allocation9 + $0x118] sm:$0xff]
    %v183 = vld [vmem:[#allocation9 + $0x120] sm:$0xff]
    %v184 = vld [vmem:[#allocation9 + $0x128] sm:$0xff]
    %v185 = vld [vmem:[#allocation9 + $0x130] sm:$0xff]
    %v186 = vld [vmem:[#allocation9 + $0x138] sm:$0xff]
    %v187 = vld [vmem:[#allocation9 + $0x140] sm:$0xff]
    %v188 = vld [vmem:[#allocation9 + $0x148] sm:$0xff]
    %v189 = vld [vmem:[#allocation9 + $0x150] sm:$0xff]
    %v190 = vld [vmem:[#allocation9 + $0x158] sm:$0xff]
    %v191 = vld [vmem:[#allocation9 + $0x160] sm:$0xff]
    %v192 = vld [vmem:[#allocation9 + $0x168] sm:$0xff]
    %v193 = vld [vmem:[#allocation9 + $0x170] sm:$0xff]
    %v194 = vld [vmem:[#allocation9 + $0x178] sm:$0xff]
    %v195 = vld [vmem:[#allocation9 + $0x180] sm:$0xff]
    %v196 = vld [vmem:[#allocation9 + $0x188] sm:$0xff]
    %v197 = vld [vmem:[#allocation9 + $0x190] sm:$0xff]
    %v198 = vld [vmem:[#allocation9 + $0x198] sm:$0xff]
    %v199 = vld [vmem:[#allocation9 + $0x1a0] sm:$0xff]
    %v200 = vld [vmem:[#allocation9 + $0x1a8] sm:$0xff]
    %v201 = vld [vmem:[#allocation9 + $0x1b0] sm:$0xff]
    %v202 = vld [vmem:[#allocation9 + $0x1b8] sm:$0xff]
    %v203 = vld [vmem:[#allocation9 + $0x1c0] sm:$0xff]
    %v204 = vld [vmem:[#allocation9 + $0x1c8] sm:$0xff]
    %v205 = vld [vmem:[#allocation9 + $0x1d0] sm:$0xff]
    %v206 = vld [vmem:[#allocation9 + $0x1d8] sm:$0xff]
    %v207 = vld [vmem:[#allocation9 + $0x1e0] sm:$0xff]
    %v208 = vld [vmem:[#allocation9 + $0x1e8] sm:$0xff]
    %v209 = vld [vmem:[#allocation9 + $0x1f0] sm:$0xff]
    %v210 = vld [vmem:[#allocation9 + $0x1f8] sm:$0xff]
    %v211 = vld [vmem:[#allocation9 + $0x200] sm:$0xff]
    %v212 = vld [vmem:[#allocation9 + $0x208] sm:$0xff]
    %v213 = vld [vmem:[#allocation9 + $0x210] sm:$0xff]
    %v214 = vld [vmem:[#allocation9 + $0x218] sm:$0xff]
    %v215 = vld [vmem:[#allocation9 + $0x220] sm:$0xff]
    %v216 = vld [vmem:[#allocation9 + $0x228] sm:$0xff]
    %v217 = vld [vmem:[#allocation9 + $0x230] sm:$0xff]
    %v218 = vld [vmem:[#allocation9 + $0x238] sm:$0xff]
    %v219 = vld [vmem:[#allocation9 + $0x240] sm:$0xff]
    %v220 = vld [vmem:[#allocation9 + $0x248] sm:$0xff]
    %v221 = vld [vmem:[#allocation9 + $0x250] sm:$0xff]
    %v222 = vld [vmem:[#allocation9 + $0x258] sm:$0xff]
    %v223 = vld [vmem:[#allocation9 + $0x260] sm:$0xff]
    %v224 = vld [vmem:[#allocation9 + $0x268] sm:$0xff]
    %v225 = vld [vmem:[#allocation9 + $0x270] sm:$0xff]
    %v226 = vld [vmem:[#allocation9 + $0x278] sm:$0xff]
    %v227 = vld [vmem:[#allocation9 + $0x280] sm:$0xff]
    %v228 = vld [vmem:[#allocation9 + $0x288] sm:$0xff]
    %v229 = vld [vmem:[#allocation9 + $0x290] sm:$0xff]
    %v230 = vld [vmem:[#allocation9 + $0x298] sm:$0xff]
    %v231 = vld [vmem:[#allocation9 + $0x2a0] sm:$0xff]
    %v232 = vld [vmem:[#allocation9 + $0x2a8] sm:$0xff]
    %v233 = vld [vmem:[#allocation9 + $0x2b0] sm:$0xff]
    %v234 = vld [vmem:[#allocation9 + $0x2b8] sm:$0xff]
    %v235 = vld [vmem:[#allocation9 + $0x2c0] sm:$0xff]
    %v236 = vld [vmem:[#allocation9 + $0x2c8] sm:$0xff]
    %v237 = vld [vmem:[#allocation9 + $0x2d0] sm:$0xff]
    %v238 = vld [vmem:[#allocation9 + $0x2d8] sm:$0xff]
    %v239 = vld [vmem:[#allocation9 + $0x2e0] sm:$0xff]
    %v240 = vld [vmem:[#allocation9 + $0x2e8] sm:$0xff]
    %v241 = vld [vmem:[#allocation9 + $0x2f0] sm:$0xff]
    %v242 = vld [vmem:[#allocation9 + $0x2f8] sm:$0xff]
    %v243 = vld [vmem:[#allocation10] sm:$0x3]
    %v245 = vperm.slane %v243, 0
    %v246 = vperm.slane %v243, 1
    %249 = vmatpush.msra.mxu0 %v177
    %250 = vmatpush.msra.mxu0 %v175
    %251 = vmatpush.msra.mxu0 %v173
    %252 = vmatpush.msra.mxu0 %v171
    %253 = vmatpush.msra.mxu0 %v169
    %254 = vmatpush.msra.mxu0 %v167
    %255 = vmatpush.msra.mxu0 %v165
    %256 = vmatpush.msra.mxu0 %v163
    %257 = vmatpush.msra.mxu0 %v161
    %258 = vmatpush.msra.mxu0 %v159
    %259 = vmatpush.msra.mxu0 %v157
    %260 = vmatpush.msra.mxu0 %v155
    %261 = vmatpush.msra.mxu0 %v153
    %262 = vmatpush.msra.mxu0 %v151
    %263 = vmatpush.msra.mxu0 %v149
    %264 = vmatpush.msra.mxu0 %v147
    %265 = vmatmul.f32.gmra.mxu0 %v141
    %v266 = vpop.f32.mrf.mxu0
    %v267 = vadd.f32 %v245, %v266
    %268 = vmatmul.f32.gmra.mxu0 %v144
    %v269 = vpop.f32.mrf.mxu0
    %v270 = vadd.f32 %v245, %v269
    %271 = vdwg.mxu0
    %272 = vmatpush.msra.mxu0 %v209
    %273 = vmatpush.msra.mxu0 %v207
    %274 = vmatpush.msra.mxu0 %v205
    %275 = vmatpush.msra.mxu0 %v203
    %276 = vmatpush.msra.mxu0 %v201
    %277 = vmatpush.msra.mxu0 %v199
    %278 = vmatpush.msra.mxu0 %v197
    %279 = vmatpush.msra.mxu0 %v195
    %280 = vmatpush.msra.mxu0 %v193
    %281 = vmatpush.msra.mxu0 %v191
    %282 = vmatpush.msra.mxu0 %v189
    %283 = vmatpush.msra.mxu0 %v187
    %284 = vmatpush.msra.mxu0 %v185
    %285 = vmatpush.msra.mxu0 %v183
    %286 = vmatpush.msra.mxu0 %v181
    %287 = vmatpush.msra.mxu0 %v179
    %288 = vmatmul.f32.gmra.mxu0 %v142
    %v289 = vpop.f32.mrf.mxu0
    %v290 = vadd.f32 %v267, %v289
    %291 = vmatmul.f32.gmra.mxu0 %v145
    %v292 = vpop.f32.mrf.mxu0
    %v293 = vadd.f32 %v270, %v292
    %294 = vdwg.mxu0
    %295 = vmatpush.msra.mxu0 %v241
    %296 = vmatpush.msra.mxu0 %v239
    %297 = vmatpush.msra.mxu0 %v237
    %298 = vmatpush.msra.mxu0 %v235
    %299 = vmatpush.msra.mxu0 %v233
    %300 = vmatpush.msra.mxu0 %v231
    %301 = vmatpush.msra.mxu0 %v229
    %302 = vmatpush.msra.mxu0 %v227
    %303 = vmatpush.msra.mxu0 %v225
    %304 = vmatpush.msra.mxu0 %v223
    %305 = vmatpush.msra.mxu0 %v221
    %306 = vmatpush.msra.mxu0 %v219
    %307 = vmatpush.msra.mxu0 %v217
    %308 = vmatpush.msra.mxu0 %v215
    %309 = vmatpush.msra.mxu0 %v213
    %310 = vmatpush.msra.mxu0 %v211
    %311 = vmatmul.f32.gmra.mxu0 %v143
    %v312 = vpop.f32.mrf.mxu0
    %v313 = vadd.f32 %v290, %v312
    %314 = vmatmul.f32.gmra.mxu0 %v146
    %v315 = vpop.f32.mrf.mxu0
    %v316 = vadd.f32 %v293, %v315
    %317 = vdwg.mxu0
    %318 = vmatpush.msra.mxu0 %v178
    %319 = vmatpush.msra.mxu0 %v176
    %320 = vmatpush.msra.mxu0 %v174
    %321 = vmatpush.msra.mxu0 %v172
    %322 = vmatpush.msra.mxu0 %v170
    %323 = vmatpush.msra.mxu0 %v168
    %324 = vmatpush.msra.mxu0 %v166
    %325 = vmatpush.msra.mxu0 %v164
    %326 = vmatpush.msra.mxu0 %v162
    %327 = vmatpush.msra.mxu0 %v160
    %328 = vmatpush.msra.mxu0 %v158
    %329 = vmatpush.msra.mxu0 %v156
    %330 = vmatpush.msra.mxu0 %v154
    %331 = vmatpush.msra.mxu0 %v152
    %332 = vmatpush.msra.mxu0 %v150
    %333 = vmatpush.msra.mxu0 %v148
    %334 = vmatmul.f32.gmra.mxu0 %v141
    %v335 = vpop.f32.mrf.mxu0
    %v336 = vadd.f32 %v246, %v335
    %337 = vmatmul.f32.gmra.mxu0 %v144
    %v338 = vpop.f32.mrf.mxu0
    %v339 = vadd.f32 %v246, %v338
    %340 = vdwg.mxu0
    %341 = vmatpush.msra.mxu0 %v210
    %342 = vmatpush.msra.mxu0 %v208
    %343 = vmatpush.msra.mxu0 %v206
    %344 = vmatpush.msra.mxu0 %v204
    %345 = vmatpush.msra.mxu0 %v202
    %346 = vmatpush.msra.mxu0 %v200
    %347 = vmatpush.msra.mxu0 %v198
    %348 = vmatpush.msra.mxu0 %v196
    %349 = vmatpush.msra.mxu0 %v194
    %350 = vmatpush.msra.mxu0 %v192
    %351 = vmatpush.msra.mxu0 %v190
    %352 = vmatpush.msra.mxu0 %v188
    %353 = vmatpush.msra.mxu0 %v186
    %354 = vmatpush.msra.mxu0 %v184
    %355 = vmatpush.msra.mxu0 %v182
    %356 = vmatpush.msra.mxu0 %v180
    %357 = vmatmul.f32.gmra.mxu0 %v142
    %v358 = vpop.f32.mrf.mxu0
    %v359 = vadd.f32 %v336, %v358
    %360 = vmatmul.f32.gmra.mxu0 %v145
    %v361 = vpop.f32.mrf.mxu0
    %v362 = vadd.f32 %v339, %v361
    %363 = vdwg.mxu0
    %364 = vmatpush.msra.mxu0 %v242
    %365 = vmatpush.msra.mxu0 %v240
    %366 = vmatpush.msra.mxu0 %v238
    %367 = vmatpush.msra.mxu0 %v236
    %368 = vmatpush.msra.mxu0 %v234
    %369 = vmatpush.msra.mxu0 %v232
    %370 = vmatpush.msra.mxu0 %v230
    %371 = vmatpush.msra.mxu0 %v228
    %372 = vmatpush.msra.mxu0 %v226
    %373 = vmatpush.msra.mxu0 %v224
    %374 = vmatpush.msra.mxu0 %v222
    %375 = vmatpush.msra.mxu0 %v220
    %376 = vmatpush.msra.mxu0 %v218
    %377 = vmatpush.msra.mxu0 %v216
    %378 = vmatpush.msra.mxu0 %v214
    %379 = vmatpush.msra.mxu0 %v212
    %380 = vmatmul.f32.gmra.mxu0 %v143
    %v381 = vpop.f32.mrf.mxu0
    %v382 = vadd.f32 %v359, %v381
    %383 = vmatmul.f32.gmra.mxu0 %v146
    %v384 = vpop.f32.mrf.mxu0
    %v385 = vadd.f32 %v362, %v384
    %386 = vdwg.mxu0
    %v387 = vxor.u32 %v382, 2147483648
    %v388 = vxor.u32 %v385, 2147483648
    %v389 = vmul.f32 %v387, 1.442695
    %v390 = vpow.pop %v389
    %v391 = vmul.f32 %v388, 1.442695
    %v392 = vpow.pop %v391
    %v393 = vadd.f32 %v390, 1.0
    %v394 = vadd.f32 %v392, 1.0
    %v395 = vrcp.pop %v393
    %v396 = vmul.f32 %v393, %v395
    %v397 = vsub.f32 1.0, %v396
    %v398 = vmul.f32 %v395, %v397
    %v399 = vadd.f32 %v395, %v398
    %vm400 = vweird.f32 %v393
    %vm401 = vweird.f32 %v395
    %vm402 = vmor %vm400, %vm401
    %v403 = vsel %vm402, %v395, %v399
    %v404 = vand.u32 2147483647, %v393
    %vm405 = vcmp.eq.f32.partialorder %v404, 8.507059e+37
    %v406 = vand.u32 %v393, 2147483648
    %v407 = vor.u32 1.1754944e-38, %v406
    %v408 = vsel %vm405, %v407, %v403
    %v409 = vmul.f32 1.0, %v408
    %v410 = vrcp.pop %v394
    %v411 = vmul.f32 %v394, %v410
    %v412 = vsub.f32 1.0, %v411
    %v413 = vmul.f32 %v410, %v412
    %v414 = vadd.f32 %v410, %v413
    %vm415 = vweird.f32 %v394
    %vm416 = vweird.f32 %v410
    %vm417 = vmor %vm415, %vm416
    %v418 = vsel %vm417, %v410, %v414
    %v419 = vand.u32 2147483647, %v394
    %vm420 = vcmp.eq.f32.partialorder %v419, 8.507059e+37
    %v421 = vand.u32 %v394, 2147483648
    %v422 = vor.u32 1.1754944e-38, %v421
    %v423 = vsel %vm420, %v422, %v418
    %v424 = vmul.f32 1.0, %v423
    %v425 = vmul.f32 %v313, %v409
    %v426 = vmul.f32 %v316, %v424
    %v427 = vadd.f32 %v118, %v425
    %v428 = vadd.f32 %v121, %v426
    %v429 = vmul.f32 %v427, 0.70710677
    %v430 = vmul.f32 %v428, 0.70710677
    %431 = vst [vmem:[#allocation2 + $0x1] sm:$0xff] %v429
    %432 = vst [vmem:[#allocation2 + $0x11] sm:$0xff] %v430
    %v433 = vld [vmem:[#allocation2] sm:$0xff]
    %v434 = vld [vmem:[#allocation2 + $0x10] sm:$0xff]
    %435 = vst [vmem:[#allocation3] sm:$0xff] %v433
    %436 = vst [vmem:[#allocation3 + $0x18] sm:$0xff] %v434
    %v437 = vld [vmem:[#allocation2 + $0x1] sm:$0xff]
    %v438 = vld [vmem:[#allocation2 + $0x11] sm:$0xff]
    %439 = vst [vmem:[#allocation3 + $0x8] sm:$0xff] %v437
    %440 = vst [vmem:[#allocation3 + $0x20] sm:$0xff] %v438
    %v441 = vld [vmem:[#allocation2 + $0x2] sm:$0xff]
    %v442 = vld [vmem:[#allocation2 + $0x12] sm:$0xff]
    %443 = vst [vmem:[#allocation3 + $0x10] sm:$0xff] %v441
    %444 = vst [vmem:[#allocation3 + $0x28] sm:$0xff] %v442
    %v445 = vld [vmem:[#allocation3] sm:$0xff]
    %v446 = vld [vmem:[#allocation3 + $0x8] sm:$0xff]
    %v447 = vld [vmem:[#allocation3 + $0x10] sm:$0xff]
    %v448 = vld [vmem:[#allocation3 + $0x18] sm:$0xff]
    %v449 = vld [vmem:[#allocation3 + $0x20] sm:$0xff]
    %v450 = vld [vmem:[#allocation3 + $0x28] sm:$0xff]
    %s451 = scalar_lea.vmem [#allocation9], 768
    %v452 = vld [vmem:[%s451] sm:$0xff]
    %v453 = vld [vmem:[%s451 + $0x8] sm:$0xff]
    %v454 = vld [vmem:[%s451 + $0x10] sm:$0xff]
    %v455 = vld [vmem:[%s451 + $0x18] sm:$0xff]
    %v456 = vld [vmem:[%s451 + $0x20] sm:$0xff]
    %v457 = vld [vmem:[%s451 + $0x28] sm:$0xff]
    %v458 = vld [vmem:[%s451 + $0x30] sm:$0xff]
    %v459 = vld [vmem:[%s451 + $0x38] sm:$0xff]
    %v460 = vld [vmem:[%s451 + $0x40] sm:$0xff]
    %v461 = vld [vmem:[%s451 + $0x48] sm:$0xff]
    %v462 = vld [vmem:[%s451 + $0x50] sm:$0xff]
    %v463 = vld [vmem:[%s451 + $0x58] sm:$0xff]
    %v464 = vld [vmem:[%s451 + $0x60] sm:$0xff]
    %v465 = vld [vmem:[%s451 + $0x68] sm:$0xff]
    %v466 = vld [vmem:[%s451 + $0x70] sm:$0xff]
    %v467 = vld [vmem:[%s451 + $0x78] sm:$0xff]
    %v468 = vld [vmem:[%s451 + $0x80] sm:$0xff]
    %v469 = vld [vmem:[%s451 + $0x88] sm:$0xff]
    %v470 = vld [vmem:[%s451 + $0x90] sm:$0xff]
    %v471 = vld [vmem:[%s451 + $0x98] sm:$0xff]
    %v472 = vld [vmem:[%s451 + $0xa0] sm:$0xff]
    %v473 = vld [vmem:[%s451 + $0xa8] sm:$0xff]
    %v474 = vld [vmem:[%s451 + $0xb0] sm:$0xff]
    %v475 = vld [vmem:[%s451 + $0xb8] sm:$0xff]
    %v476 = vld [vmem:[%s451 + $0xc0] sm:$0xff]
    %v477 = vld [vmem:[%s451 + $0xc8] sm:$0xff]
    %v478 = vld [vmem:[%s451 + $0xd0] sm:$0xff]
    %v479 = vld [vmem:[%s451 + $0xd8] sm:$0xff]
    %v480 = vld [vmem:[%s451 + $0xe0] sm:$0xff]
    %v481 = vld [vmem:[%s451 + $0xe8] sm:$0xff]
    %v482 = vld [vmem:[%s451 + $0xf0] sm:$0xff]
    %v483 = vld [vmem:[%s451 + $0xf8] sm:$0xff]
    %v484 = vld [vmem:[%s451 + $0x100] sm:$0xff]
    %v485 = vld [vmem:[%s451 + $0x108] sm:$0xff]
    %v486 = vld [vmem:[%s451 + $0x110] sm:$0xff]
    %v487 = vld [vmem:[%s451 + $0x118] sm:$0xff]
    %v488 = vld [vmem:[%s451 + $0x120] sm:$0xff]
    %v489 = vld [vmem:[%s451 + $0x128] sm:$0xff]
    %v490 = vld [vmem:[%s451 + $0x130] sm:$0xff]
    %v491 = vld [vmem:[%s451 + $0x138] sm:$0xff]
    %v492 = vld [vmem:[%s451 + $0x140] sm:$0xff]
    %v493 = vld [vmem:[%s451 + $0x148] sm:$0xff]
    %v494 = vld [vmem:[%s451 + $0x150] sm:$0xff]
    %v495 = vld [vmem:[%s451 + $0x158] sm:$0xff]
    %v496 = vld [vmem:[%s451 + $0x160] sm:$0xff]
    %v497 = vld [vmem:[%s451 + $0x168] sm:$0xff]
    %v498 = vld [vmem:[%s451 + $0x170] sm:$0xff]
    %v499 = vld [vmem:[%s451 + $0x178] sm:$0xff]
    %v500 = vld [vmem:[%s451 + $0x180] sm:$0xff]
    %v501 = vld [vmem:[%s451 + $0x188] sm:$0xff]
    %v502 = vld [vmem:[%s451 + $0x190] sm:$0xff]
    %v503 = vld [vmem:[%s451 + $0x198] sm:$0xff]
    %v504 = vld [vmem:[%s451 + $0x1a0] sm:$0xff]
    %v505 = vld [vmem:[%s451 + $0x1a8] sm:$0xff]
    %v506 = vld [vmem:[%s451 + $0x1b0] sm:$0xff]
    %v507 = vld [vmem:[%s451 + $0x1b8] sm:$0xff]
    %v508 = vld [vmem:[%s451 + $0x1c0] sm:$0xff]
    %v509 = vld [vmem:[%s451 + $0x1c8] sm:$0xff]
    %v510 = vld [vmem:[%s451 + $0x1d0] sm:$0xff]
    %v511 = vld [vmem:[%s451 + $0x1d8] sm:$0xff]
    %v512 = vld [vmem:[%s451 + $0x1e0] sm:$0xff]
    %v513 = vld [vmem:[%s451 + $0x1e8] sm:$0xff]
    %v514 = vld [vmem:[%s451 + $0x1f0] sm:$0xff]
    %v515 = vld [vmem:[%s451 + $0x1f8] sm:$0xff]
    %v516 = vld [vmem:[%s451 + $0x200] sm:$0xff]
    %v517 = vld [vmem:[%s451 + $0x208] sm:$0xff]
    %v518 = vld [vmem:[%s451 + $0x210] sm:$0xff]
    %v519 = vld [vmem:[%s451 + $0x218] sm:$0xff]
    %v520 = vld [vmem:[%s451 + $0x220] sm:$0xff]
    %v521 = vld [vmem:[%s451 + $0x228] sm:$0xff]
    %v522 = vld [vmem:[%s451 + $0x230] sm:$0xff]
    %v523 = vld [vmem:[%s451 + $0x238] sm:$0xff]
    %v524 = vld [vmem:[%s451 + $0x240] sm:$0xff]
    %v525 = vld [vmem:[%s451 + $0x248] sm:$0xff]
    %v526 = vld [vmem:[%s451 + $0x250] sm:$0xff]
    %v527 = vld [vmem:[%s451 + $0x258] sm:$0xff]
    %v528 = vld [vmem:[%s451 + $0x260] sm:$0xff]
    %v529 = vld [vmem:[%s451 + $0x268] sm:$0xff]
    %v530 = vld [vmem:[%s451 + $0x270] sm:$0xff]
    %v531 = vld [vmem:[%s451 + $0x278] sm:$0xff]
    %v532 = vld [vmem:[%s451 + $0x280] sm:$0xff]
    %v533 = vld [vmem:[%s451 + $0x288] sm:$0xff]
    %v534 = vld [vmem:[%s451 + $0x290] sm:$0xff]
    %v535 = vld [vmem:[%s451 + $0x298] sm:$0xff]
    %v536 = vld [vmem:[%s451 + $0x2a0] sm:$0xff]
    %v537 = vld [vmem:[%s451 + $0x2a8] sm:$0xff]
    %v538 = vld [vmem:[%s451 + $0x2b0] sm:$0xff]
    %v539 = vld [vmem:[%s451 + $0x2b8] sm:$0xff]
    %v540 = vld [vmem:[%s451 + $0x2c0] sm:$0xff]
    %v541 = vld [vmem:[%s451 + $0x2c8] sm:$0xff]
    %v542 = vld [vmem:[%s451 + $0x2d0] sm:$0xff]
    %v543 = vld [vmem:[%s451 + $0x2d8] sm:$0xff]
    %v544 = vld [vmem:[%s451 + $0x2e0] sm:$0xff]
    %v545 = vld [vmem:[%s451 + $0x2e8] sm:$0xff]
    %v546 = vld [vmem:[%s451 + $0x2f0] sm:$0xff]
    %v547 = vld [vmem:[%s451 + $0x2f8] sm:$0xff]
    %s548 = scalar_lea.vmem [#allocation10], 2
    %v549 = vld [vmem:[%s548] sm:$0x3]
    %v551 = vperm.slane %v549, 0
    %v552 = vperm.slane %v549, 1
    %555 = vmatpush.msra.mxu0 %v482
    %556 = vmatpush.msra.mxu0 %v480
    %557 = vmatpush.msra.mxu0 %v478
    %558 = vmatpush.msra.mxu0 %v476
    %559 = vmatpush.msra.mxu0 %v474
    %560 = vmatpush.msra.mxu0 %v472
    %561 = vmatpush.msra.mxu0 %v470
    %562 = vmatpush.msra.mxu0 %v468
    %563 = vmatpush.msra.mxu0 %v466
    %564 = vmatpush.msra.mxu0 %v464
    %565 = vmatpush.msra.mxu0 %v462
    %566 = vmatpush.msra.mxu0 %v460
    %567 = vmatpush.msra.mxu0 %v458
    %568 = vmatpush.msra.mxu0 %v456
    %569 = vmatpush.msra.mxu0 %v454
    %570 = vmatpush.msra.mxu0 %v452
    %571 = vmatmul.f32.gmra.mxu0 %v445
    %v572 = vpop.f32.mrf.mxu0
    %v573 = vadd.f32 %v551, %v572
    %574 = vmatmul.f32.gmra.mxu0 %v448
    %v575 = vpop.f32.mrf.mxu0
    %v576 = vadd.f32 %v551, %v575
    %577 = vdwg.mxu0
    %578 = vmatpush.msra.mxu0 %v514
    %579 = vmatpush.msra.mxu0 %v512
    %580 = vmatpush.msra.mxu0 %v510
    %581 = vmatpush.msra.mxu0 %v508
    %582 = vmatpush.msra.mxu0 %v506
    %583 = vmatpush.msra.mxu0 %v504
    %584 = vmatpush.msra.mxu0 %v502
    %585 = vmatpush.msra.mxu0 %v500
    %586 = vmatpush.msra.mxu0 %v498
    %587 = vmatpush.msra.mxu0 %v496
    %588 = vmatpush.msra.mxu0 %v494
    %589 = vmatpush.msra.mxu0 %v492
    %590 = vmatpush.msra.mxu0 %v490
    %591 = vmatpush.msra.mxu0 %v488
    %592 = vmatpush.msra.mxu0 %v486
    %593 = vmatpush.msra.mxu0 %v484
    %594 = vmatmul.f32.gmra.mxu0 %v446
    %v595 = vpop.f32.mrf.mxu0
    %v596 = vadd.f32 %v573, %v595
    %597 = vmatmul.f32.gmra.mxu0 %v449
    %v598 = vpop.f32.mrf.mxu0
    %v599 = vadd.f32 %v576, %v598
    %600 = vdwg.mxu0
    %601 = vmatpush.msra.mxu0 %v546
    %602 = vmatpush.msra.mxu0 %v544
    %603 = vmatpush.msra.mxu0 %v542
    %604 = vmatpush.msra.mxu0 %v540
    %605 = vmatpush.msra.mxu0 %v538
    %606 = vmatpush.msra.mxu0 %v536
    %607 = vmatpush.msra.mxu0 %v534
    %608 = vmatpush.msra.mxu0 %v532
    %609 = vmatpush.msra.mxu0 %v530
    %610 = vmatpush.msra.mxu0 %v528
    %611 = vmatpush.msra.mxu0 %v526
    %612 = vmatpush.msra.mxu0 %v524
    %613 = vmatpush.msra.mxu0 %v522
    %614 = vmatpush.msra.mxu0 %v520
    %615 = vmatpush.msra.mxu0 %v518
    %616 = vmatpush.msra.mxu0 %v516
    %617 = vmatmul.f32.gmra.mxu0 %v447
    %v618 = vpop.f32.mrf.mxu0
    %v619 = vadd.f32 %v596, %v618
    %620 = vmatmul.f32.gmra.mxu0 %v450
    %v621 = vpop.f32.mrf.mxu0
    %v622 = vadd.f32 %v599, %v621
    %623 = vdwg.mxu0
    %624 = vmatpush.msra.mxu0 %v483
    %625 = vmatpush.msra.mxu0 %v481
    %626 = vmatpush.msra.mxu0 %v479
    %627 = vmatpush.msra.mxu0 %v477
    %628 = vmatpush.msra.mxu0 %v475
    %629 = vmatpush.msra.mxu0 %v473
    %630 = vmatpush.msra.mxu0 %v471
    %631 = vmatpush.msra.mxu0 %v469
    %632 = vmatpush.msra.mxu0 %v467
    %633 = vmatpush.msra.mxu0 %v465
    %634 = vmatpush.msra.mxu0 %v463
    %635 = vmatpush.msra.mxu0 %v461
    %636 = vmatpush.msra.mxu0 %v459
    %637 = vmatpush.msra.mxu0 %v457
    %638 = vmatpush.msra.mxu0 %v455
    %639 = vmatpush.msra.mxu0 %v453
    %640 = vmatmul.f32.gmra.mxu0 %v445
    %v641 = vpop.f32.mrf.mxu0
    %v642 = vadd.f32 %v552, %v641
    %643 = vmatmul.f32.gmra.mxu0 %v448
    %v644 = vpop.f32.mrf.mxu0
    %v645 = vadd.f32 %v552, %v644
    %646 = vdwg.mxu0
    %647 = vmatpush.msra.mxu0 %v515
    %648 = vmatpush.msra.mxu0 %v513
    %649 = vmatpush.msra.mxu0 %v511
    %650 = vmatpush.msra.mxu0 %v509
    %651 = vmatpush.msra.mxu0 %v507
    %652 = vmatpush.msra.mxu0 %v505
    %653 = vmatpush.msra.mxu0 %v503
    %654 = vmatpush.msra.mxu0 %v501
    %655 = vmatpush.msra.mxu0 %v499
    %656 = vmatpush.msra.mxu0 %v497
    %657 = vmatpush.msra.mxu0 %v495
    %658 = vmatpush.msra.mxu0 %v493
    %659 = vmatpush.msra.mxu0 %v491
    %660 = vmatpush.msra.mxu0 %v489
    %661 = vmatpush.msra.mxu0 %v487
    %662 = vmatpush.msra.mxu0 %v485
    %663 = vmatmul.f32.gmra.mxu0 %v446
    %v664 = vpop.f32.mrf.mxu0
    %v665 = vadd.f32 %v642, %v664
    %666 = vmatmul.f32.gmra.mxu0 %v449
    %v667 = vpop.f32.mrf.mxu0
    %v668 = vadd.f32 %v645, %v667
    %669 = vdwg.mxu0
    %670 = vmatpush.msra.mxu0 %v547
    %671 = vmatpush.msra.mxu0 %v545
    %672 = vmatpush.msra.mxu0 %v543
    %673 = vmatpush.msra.mxu0 %v541
    %674 = vmatpush.msra.mxu0 %v539
    %675 = vmatpush.msra.mxu0 %v537
    %676 = vmatpush.msra.mxu0 %v535
    %677 = vmatpush.msra.mxu0 %v533
    %678 = vmatpush.msra.mxu0 %v531
    %679 = vmatpush.msra.mxu0 %v529
    %680 = vmatpush.msra.mxu0 %v527
    %681 = vmatpush.msra.mxu0 %v525
    %682 = vmatpush.msra.mxu0 %v523
    %683 = vmatpush.msra.mxu0 %v521
    %684 = vmatpush.msra.mxu0 %v519
    %685 = vmatpush.msra.mxu0 %v517
    %686 = vmatmul.f32.gmra.mxu0 %v447
    %v687 = vpop.f32.mrf.mxu0
    %v688 = vadd.f32 %v665, %v687
    %689 = vmatmul.f32.gmra.mxu0 %v450
    %v690 = vpop.f32.mrf.mxu0
    %v691 = vadd.f32 %v668, %v690
    %692 = vdwg.mxu0
    %v693 = vxor.u32 %v688, 2147483648
    %v694 = vxor.u32 %v691, 2147483648
    %v695 = vmul.f32 %v693, 1.442695
    %v696 = vpow.pop %v695
    %v697 = vmul.f32 %v694, 1.442695
    %v698 = vpow.pop %v697
    %v699 = vadd.f32 %v696, 1.0
    %v700 = vadd.f32 %v698, 1.0
    %v701 = vrcp.pop %v699
    %v702 = vmul.f32 %v699, %v701
    %v703 = vsub.f32 1.0, %v702
    %v704 = vmul.f32 %v701, %v703
    %v705 = vadd.f32 %v701, %v704
    %vm706 = vweird.f32 %v699
    %vm707 = vweird.f32 %v701
    %vm708 = vmor %vm706, %vm707
    %v709 = vsel %vm708, %v701, %v705
    %v710 = vand.u32 2147483647, %v699
    %vm711 = vcmp.eq.f32.partialorder %v710, 8.507059e+37
    %v712 = vand.u32 %v699, 2147483648
    %v713 = vor.u32 1.1754944e-38, %v712
    %v714 = vsel %vm711, %v713, %v709
    %v715 = vmul.f32 1.0, %v714
    %v716 = vrcp.pop %v700
    %v717 = vmul.f32 %v700, %v716
    %v718 = vsub.f32 1.0, %v717
    %v719 = vmul.f32 %v716, %v718
    %v720 = vadd.f32 %v716, %v719
    %vm721 = vweird.f32 %v700
    %vm722 = vweird.f32 %v716
    %vm723 = vmor %vm721, %vm722
    %v724 = vsel %vm723, %v716, %v720
    %v725 = vand.u32 2147483647, %v700
    %vm726 = vcmp.eq.f32.partialorder %v725, 8.507059e+37
    %v727 = vand.u32 %v700, 2147483648
    %v728 = vor.u32 1.1754944e-38, %v727
    %v729 = vsel %vm726, %v728, %v724
    %v730 = vmul.f32 1.0, %v729
    %v731 = vmul.f32 %v619, %v715
    %v732 = vmul.f32 %v622, %v730
    %v733 = vadd.f32 %v429, %v731
    %v734 = vadd.f32 %v430, %v732
    %v735 = vmul.f32 %v733, 0.70710677
    %v736 = vmul.f32 %v734, 0.70710677
    %737 = vst [vmem:[#allocation12] sm:$0xff] %v735
    %738 = vst [vmem:[#allocation12 + $0x8] sm:$0xff] %v736
    // Predicated region
    $region38: #{tpu_custom_call.1} parent=1 // pred_check
      _
    $region39: #{tpu_custom_call.1} parent=1 // pred_check_branch
      %740 = sbr.rel (0) target = $region41
    $region40: #{tpu_custom_call.1} parent=1 // pred_region
      %742 = vsyncadd [#allocation6], 0
      %s743 = sshll.u32 [#allocation12], 4
      %s744 = int_to_ptr.vmem [resolvable:$true] %s743
      %s745 = sshll.u32 %s5, 4
      %s746 = int_to_ptr.hbm [resolvable:$true] %s745
      %751 = dma.vmem_to_hbm [thread:$0]  %s744, 256, %s746, [#allocation6], 128, 128, 8
    $region41: #{tpu_custom_call.1} parent=1 // pred_fallthru
      _
    // Predicated region
    $region42: #{tpu_custom_call.1} parent=1 // pred_check
      _
    $region43: #{tpu_custom_call.1} parent=1 // pred_check_branch
      %753 = sbr.rel (0) target = $region45
    $region44: #{tpu_custom_call.1} parent=1 // pred_region
      %755 = dma.done [#allocation6], 256
    $region45: #{tpu_custom_call.1} parent=1 // pred_fallthru
      _
    %756 = vsyncpa [#allocation5], 1
    %757 = vsyncpa [#allocation8], 1
    %758 = vsyncpa [#allocation11], 1
    %759 = vsyncpa [#allocation6], 1

</llo_original>
